<compile_context>
chip_gen: v6e
topology: v6e:2x2x1
jax: 0.10.0
libtpu: 0.0.40
codegen_flags: <defaults>
</compile_context>

<pallas_src>
import functools

import jax
import jax.numpy as jnp
from jax.experimental import pallas as pl
from jax.experimental.pallas import tpu as pltpu

NEG_SLOPE = 0.01             # nn.LeakyReLU default negative_slope
LN_EPS = 1e-5                # nn.LayerNorm default eps
MATMUL_DTYPE = jnp.bfloat16  # MXU operand dtype (f32 accumulation)


def _round_up(x, m):
    return (x + m - 1) // m * m


def _layernorm(x, gamma, beta):
    mean = jnp.mean(x, axis=-1, keepdims=True)
    var = jnp.mean((x - mean) ** 2, axis=-1, keepdims=True)   # biased, like torch
    return (x - mean) * jax.lax.rsqrt(var + LN_EPS) * gamma + beta


def _leaky_relu(x):
    return jnp.where(x >= 0, x, NEG_SLOPE * x)


# ----------------------------------------------------------------------------
# Kernel: grid = (row_tiles, hidden_chunks); hidden chunk axis is a reduction.
# ----------------------------------------------------------------------------
def ffn_kernel(x_ref, w1_ref, b1_ref, w2_ref, b2_ref, ln_ref, o_ref,
               acc_ref, lnx_ref):
    c = pl.program_id(1)

    @pl.when(c == 0)
    def _():
        # First hidden chunk of this row tile: LayerNorm the rows once into
        # scratch and zero the (tm, d_model) f32 accumulator.
        ln = ln_ref[...]
        lnx_ref[...] = _layernorm(x_ref[...].astype(jnp.float32),
                                  ln[0:1, :], ln[1:2, :])
        acc_ref[...] = jnp.zeros_like(acc_ref)

    # linear_1 chunk + LeakyReLU  (+ dropout == identity at eval)
    h = jnp.dot(lnx_ref[...].astype(w1_ref.dtype), w1_ref[...],
                preferred_element_type=jnp.float32) + b1_ref[...]
    # Fuse LeakyReLU with the narrow cast so only the matmul-dtype copy of the
    # (tm, ck) activation stays live into the second MXU op.
    h = _leaky_relu(h).astype(w2_ref.dtype)
    # linear_2 chunk accumulation (exact: LeakyReLU is elementwise over hidden).
    acc_ref[...] += jnp.dot(h, w2_ref[...], preferred_element_type=jnp.float32)

    @pl.when(c == pl.num_programs(1) - 1)
    def _():
        ln = ln_ref[...]
        y = _leaky_relu(acc_ref[...] + b2_ref[...])    # + dropout_2 == identity
        o_ref[...] = _layernorm(y, ln[2:3, :], ln[3:4, :]).astype(o_ref.dtype)


# ----------------------------------------------------------------------------
# Sizing helpers (generation-aware VMEM budget, tile / chunk selection).
# ----------------------------------------------------------------------------
def _usable_vmem_bytes():
    try:
        cap = int(pltpu.get_tpu_info().vmem_capacity_bytes)
    except Exception:
        cap = 64 << 20   # conservative fallback: v7x per-TensorCore VMEM
    # Leave headroom for Mosaic internal scratch / semaphores / pipelining
    # (~56 MiB usable on v7x, ~108 MiB on v5e/v6e).
    return min(cap - (8 << 20), int(cap * 0.85))


def _choose_hidden_chunk(d_model, hidden, vmem_cap, w_item):
    # Keep both weight matrices fully resident (single-buffered) when they fit
    # comfortably; otherwise stream 128-aligned hidden panels.
    if hidden <= 512 or 2 * d_model * hidden * w_item <= vmem_cap // 3:
        return hidden
    for ck in (2048, 1024, 512, 256, 128):
        if hidden % ck == 0:
            return ck
    return hidden  # TODO(synk): hidden with no 128-aligned divisor stays unchunked.


def _vmem_bytes(tm, d_model, ck, n_chunks, x_item, o_item, w_item):
    wbuf = 1 if n_chunks == 1 else 2                  # resident vs streamed panels
    w = wbuf * 2 * d_model * ck * w_item              # w1 + w2 panels
    bias = wbuf * ck * 4 + d_model * 4 + 4 * d_model * 4
    io = 2 * tm * d_model * (x_item + o_item)         # double-buffered row tiles
    scratch = 2 * tm * d_model * 4                    # acc + LN(x) f32 scratch
    inter = tm * ck * (4 + w_item)                    # f32 + matmul-dtype chunk act
    return w + bias + io + scratch + inter


def _choose_tm(n, requested, d_model, ck, n_chunks, x_item, o_item, w_item, cap):
    min_sub = max(8, 32 // x_item)                    # sublane multiple for x dtype
    if n <= 256:
        return _round_up(n, min_sub)
    tm = max(256, min(requested, _round_up(n, 256)) // 256 * 256)
    # Guarantee >=2 row tiles so v7x's two TensorCores both get work.
    if pl.cdiv(n, tm) < 2:
        tm = max(256, _round_up(pl.cdiv(n, 2), 256))
    # Shrink until the per-step working set genuinely fits the VMEM cap.
    while tm > 256 and int(1.25 * _vmem_bytes(tm, d_model, ck, n_chunks,
                                              x_item, o_item, w_item)) > cap:
        tm -= 256
    return tm


# ----------------------------------------------------------------------------
# pallas_call wrapper.
# ----------------------------------------------------------------------------
@functools.partial(
    jax.jit,
    static_argnames=("tm", "hidden_chunk", "matmul_dtype", "single_buffer_consts"))
def _ffn_forward(x, params, *, tm, hidden_chunk, matmul_dtype,
                 single_buffer_consts):
    d_model = x.shape[-1]
    hidden = params["w1"].shape[-1]
    lead = x.shape[:-1]
    x2 = x.reshape(-1, d_model)
    n = x2.shape[0]

    w_item = jnp.dtype(matmul_dtype).itemsize
    x_item = x2.dtype.itemsize
    o_item = x_item
    cap = _usable_vmem_bytes()

    ck = hidden_chunk if hidden_chunk is not None else _choose_hidden_chunk(
        d_model, hidden, cap, w_item)
    if hidden % ck != 0:
        raise ValueError("hidden_chunk must divide hidden_dim")
    n_chunks = hidden // ck

    tm_eff = _choose_tm(n, tm, d_model, ck, n_chunks, x_item, o_item, w_item, cap)
    need = _vmem_bytes(tm_eff, d_model, ck, n_chunks, x_item, o_item, w_item)
    vmem_limit = int(min(max(int(1.25 * need) + (2 << 20), 16 << 20), cap))

    w1 = params["w1"].astype(matmul_dtype)
    w2 = params["w2"].astype(matmul_dtype)
    b1 = params["b1"].astype(jnp.float32)
    b2 = params["b2"].astype(jnp.float32)
    ln = jnp.concatenate(
        [params["g1"], params["be1"], params["g2"], params["be2"]],
        axis=0).astype(jnp.float32)                       # (4, d_model)

    def const(shape, index_map):
        # Block index never changes -> a second pipeline buffer is pure waste.
        if single_buffer_consts:
            return pl.BlockSpec(shape, index_map, pipeline_mode=pl.Buffered(1))
        return pl.BlockSpec(shape, index_map)

    def panel(shape, index_map):
        # Weight panels: constant (resident) when unchunked, streamed otherwise.
        if n_chunks == 1:
            return const(shape, index_map)
        return pl.BlockSpec(shape, index_map)

    row_spec = pl.BlockSpec((tm_eff, d_model), lambda i, c: (i, 0))
    in_specs = [
        row_spec,                                             # x rows
        panel((d_model, ck), lambda i, c: (0, c)),            # w1 panel
        panel((1, ck), lambda i, c: (0, c)),                  # b1 panel
        panel((ck, d_model), lambda i, c: (c, 0)),            # w2 panel
        const((1, d_model), lambda i, c: (0, 0)),             # b2
        const((4, d_model), lambda i, c: (0, 0)),             # packed LN params
    ]

    cost = pl.CostEstimate(
        flops=4 * n * d_model * hidden,                       # two matmuls
        transcendentals=2 * n,                                # two rsqrt per row
        bytes_accessed=2 * d_model * hidden * w_item
        + n * d_model * (x_item + o_item) + (6 * d_model + hidden) * 4)

    out = pl.pallas_call(
        ffn_kernel,
        out_shape=jax.ShapeDtypeStruct((n, d_model), x.dtype),
        grid=(pl.cdiv(n, tm_eff), n_chunks),
        in_specs=in_specs,
        out_specs=row_spec,
        scratch_shapes=[pltpu.VMEM((tm_eff, d_model), jnp.float32),   # accumulator
                        pltpu.VMEM((tm_eff, d_model), jnp.float32)],  # LN(x)
        compiler_params=pltpu.CompilerParams(
            dimension_semantics=("parallel", "arbitrary"),
            vmem_limit_bytes=vmem_limit),
        cost_estimate=cost,
    )(x2, w1, b1, w2, b2, ln)

    return out.reshape(*lead, d_model)


_SINGLE_BUFFER_OK = True


def feed_forward_block(x, params, *, tm=512, hidden_chunk=None,
                       matmul_dtype=MATMUL_DTYPE):
    """Fused FeedForwardBlock forward (eval mode).  x: (..., d_model)."""
    global _SINGLE_BUFFER_OK
    if _SINGLE_BUFFER_OK:
        try:
            return _ffn_forward(x, params, tm=tm, hidden_chunk=hidden_chunk,
                                matmul_dtype=matmul_dtype,
                                single_buffer_consts=True)
        except Exception:
            # TODO(synk): jax build without BlockSpec(pipeline_mode=Buffered(1))
            # support -> fall back to default double-buffered constant blocks.
            _SINGLE_BUFFER_OK = False
    return _ffn_forward(x, params, tm=tm, hidden_chunk=hidden_chunk,
                        matmul_dtype=matmul_dtype, single_buffer_consts=False)


# ----------------------------------------------------------------------------
# Parameter init (mirrors nn.Linear / nn.LayerNorm shapes) and pure-JAX ref.
# ----------------------------------------------------------------------------
def init_params(key, d_model, hidden, dtype=jnp.float32):
    k1, k2, k3, k4 = jax.random.split(key, 4)
    lim1 = 1.0 / jnp.sqrt(d_model)
    lim2 = 1.0 / jnp.sqrt(hidden)
    return {
        # linear_1: torch weight (hidden, d_model) -> stored transposed
        "w1": jax.random.uniform(k1, (d_model, hidden), dtype, -lim1, lim1),
        "b1": jax.random.uniform(k2, (1, hidden), dtype, -lim1, lim1),
        # linear_2: torch weight (d_model, hidden) -> stored transposed
        "w2": jax.random.uniform(k3, (hidden, d_model), dtype, -lim2, lim2),
        "b2": jax.random.uniform(k4, (1, d_model), dtype, -lim2, lim2),
        # LayerNorm affine params (torch defaults: ones / zeros)
        "g1": jnp.ones((1, d_model), dtype),
        "be1": jnp.zeros((1, d_model), dtype),
        "g2": jnp.ones((1, d_model), dtype),
        "be2": jnp.zeros((1, d_model), dtype),
    }


def _reference(x, p, matmul_dtype=MATMUL_DTYPE):
    """Plain-JAX reference of the torch forward (eval mode) with the same
    matmul-operand numerics as the kernel."""
    def ln(v, g, b):
        m = jnp.mean(v, -1, keepdims=True)
        s = jnp.mean((v - m) ** 2, -1, keepdims=True)
        return (v - m) * jax.lax.rsqrt(s + LN_EPS) * g + b
    h = ln(x.astype(jnp.float32), p["g1"], p["be1"])
    h = jnp.dot(h.astype(matmul_dtype), p["w1"].astype(matmul_dtype),
                preferred_element_type=jnp.float32) + p["b1"]
    h = jnp.where(h >= 0, h, NEG_SLOPE * h)
    h = jnp.dot(h.astype(matmul_dtype), p["w2"].astype(matmul_dtype),
                preferred_element_type=jnp.float32) + p["b2"]
    h = jnp.where(h >= 0, h, NEG_SLOPE * h)
    return ln(h, p["g2"], p["be2"])


if __name__ == "__main__":
    key = jax.random.PRNGKey(0)
    kx1, kx2, kx3, kp1, kp2 = jax.random.split(key, 5)

    # Case 1: d_model=32, hidden=16, rows = 2*8 = 16.
    p_small = init_params(kp1, 32, 16)
    x1 = jax.random.normal(kx1, (2, 8, 32), jnp.float32)
    o1 = jax.block_until_ready(feed_forward_block(x1, p_small))
    r1 = _reference(x1, p_small)
    assert o1.shape == x1.shape
    assert jnp.allclose(o1, r1, atol=5e-3, rtol=5e-3), "case-1 mismatch"

    # Case 2: ragged row count (n=15) exercising the partial last row block
    # (no wrapper-level padding any more).
    x2 = jax.random.normal(kx2, (3, 5, 32), jnp.float32)
    o2 = jax.block_until_ready(feed_forward_block(x2, p_small))
    r2 = _reference(x2, p_small)
    assert o2.shape == x2.shape
    assert jnp.allclose(o2, r2, atol=5e-3, rtol=5e-3), "case-2 (ragged) mismatch"

    # Case 3: forced hidden-dim chunking (2 chunks of 128) exercising the
    # streamed-weight accumulation path.
    p_big = init_params(kp2, 128, 256)
    x3 = jax.random.normal(kx3, (2, 16, 128), jnp.float32)
    o3 = jax.block_until_ready(feed_forward_block(x3, p_big, hidden_chunk=128))
    r3 = _reference(x3, p_big)
    assert o3.shape == x3.shape
    assert jnp.allclose(o3, r3, atol=5e-3, rtol=5e-3), "case-3 (chunked) mismatch"

    print("KERNEL_OK")
</pallas_src>

<mosaic_0001>
module attributes {stable_mosaic.version = 11 : i64} {
  func.func @ffn_kernel(%arg0: i32, %arg1: i32, %arg2: memref<16x32xf32, #tpu.memory_space<vmem>>, %arg3: memref<32x16xbf16, #tpu.memory_space<vmem>>, %arg4: memref<1x16xf32, #tpu.memory_space<vmem>>, %arg5: memref<16x32xbf16, #tpu.memory_space<vmem>>, %arg6: memref<1x32xf32, #tpu.memory_space<vmem>>, %arg7: memref<4x32xf32, #tpu.memory_space<vmem>>, %arg8: memref<16x32xf32, #tpu.memory_space<vmem>>, %arg9: memref<16x32xf32, #tpu.memory_space<vmem>>, %arg10: memref<16x32xf32, #tpu.memory_space<vmem>>) attributes {dimension_semantics = [#tpu.dimension_semantics<parallel>, #tpu.dimension_semantics<arbitrary>], iteration_bounds = array<i64: 1, 1>, scalar_prefetch = 0 : i64, scratch_operands = 2 : i64, tpu.core_type = #tpu.core_type<tc>, window_params = [{transform_indices = @transform_0, window_bounds = array<i64: 16, 32>}, {pipeline_mode = #tpu.pipeline_mode<synchronous>, transform_indices = @transform_1, window_bounds = array<i64: 32, 16>}, {pipeline_mode = #tpu.pipeline_mode<synchronous>, transform_indices = @transform_2, window_bounds = array<i64: 1, 16>}, {pipeline_mode = #tpu.pipeline_mode<synchronous>, transform_indices = @transform_3, window_bounds = array<i64: 16, 32>}, {pipeline_mode = #tpu.pipeline_mode<synchronous>, transform_indices = @transform_4, window_bounds = array<i64: 1, 32>}, {pipeline_mode = #tpu.pipeline_mode<synchronous>, transform_indices = @transform_5, window_bounds = array<i64: 4, 32>}, {transform_indices = @transform_6, window_bounds = array<i64: 16, 32>}]} {
    %c0_i32 = arith.constant 0 : i32
    %0 = arith.cmpi eq, %arg1, %c0_i32 : i32
    %1 = arith.extui %0 : i1 to i32
    %c0_i32_0 = arith.constant 0 : i32
    %2 = arith.cmpi ne, %1, %c0_i32_0 : i32
    scf.if %2 {
      %c0_17 = arith.constant 0 : index
      %c0_18 = arith.constant 0 : index
      %24 = vector.load %arg7[%c0_17, %c0_18] : memref<4x32xf32, #tpu.memory_space<vmem>>, vector<4x32xf32>
      %c0_19 = arith.constant 0 : index
      %c0_20 = arith.constant 0 : index
      %25 = vector.load %arg2[%c0_19, %c0_20] : memref<16x32xf32, #tpu.memory_space<vmem>>, vector<16x32xf32>
      %26 = vector.extract_strided_slice %24 {offsets = [0, 0], sizes = [1, 32], strides = [1, 1]} : vector<4x32xf32> to vector<1x32xf32>
      %27 = vector.extract_strided_slice %24 {offsets = [1, 0], sizes = [1, 32], strides = [1, 1]} : vector<4x32xf32> to vector<1x32xf32>
      %cst_21 = arith.constant dense<0.000000e+00> : vector<16xf32>
      %28 = vector.multi_reduction <add>, %25, %cst_21 [1] : vector<16x32xf32> to vector<16xf32>
      %29 = vector.shape_cast %28 : vector<16xf32> to vector<16x1xf32>
      %cst_22 = arith.constant 3.200000e+01 : f32
      %30 = vector.broadcast %cst_22 : f32 to vector<16x1xf32>
      %31 = arith.divf %29, %30 : vector<16x1xf32>
      %32 = vector.broadcast %31 : vector<16x1xf32> to vector<16x32xf32>
      %33 = arith.subf %25, %32 : vector<16x32xf32>
      %34 = arith.mulf %33, %33 : vector<16x32xf32>
      %cst_23 = arith.constant dense<0.000000e+00> : vector<16xf32>
      %35 = vector.multi_reduction <add>, %34, %cst_23 [1] : vector<16x32xf32> to vector<16xf32>
      %36 = vector.shape_cast %35 : vector<16xf32> to vector<16x1xf32>
      %cst_24 = arith.constant 3.200000e+01 : f32
      %37 = vector.broadcast %cst_24 : f32 to vector<16x1xf32>
      %38 = arith.divf %36, %37 : vector<16x1xf32>
      %39 = vector.broadcast %31 : vector<16x1xf32> to vector<16x32xf32>
      %40 = arith.subf %25, %39 : vector<16x32xf32>
      %cst_25 = arith.constant 9.99999974E-6 : f32
      %41 = vector.broadcast %cst_25 : f32 to vector<16x1xf32>
      %42 = arith.addf %38, %41 : vector<16x1xf32>
      %43 = math.rsqrt %42 : vector<16x1xf32>
      %44 = vector.broadcast %43 : vector<16x1xf32> to vector<16x32xf32>
      %45 = arith.mulf %40, %44 : vector<16x32xf32>
      %46 = vector.broadcast %26 : vector<1x32xf32> to vector<16x32xf32>
      %47 = arith.mulf %45, %46 : vector<16x32xf32>
      %48 = vector.broadcast %27 : vector<1x32xf32> to vector<16x32xf32>
      %49 = arith.addf %47, %48 : vector<16x32xf32>
      %c0_26 = arith.constant 0 : index
      %c0_27 = arith.constant 0 : index
      %50 = vector.load %arg10[%c0_26, %c0_27] : memref<16x32xf32, #tpu.memory_space<vmem>>, vector<16x32xf32>
      tpu.vector_store %arg10[%c0_26, %c0_27], %49 {strides = array<i32>} : memref<16x32xf32, #tpu.memory_space<vmem>>, vector<16x32xf32>,
      %cst_28 = arith.constant 0.000000e+00 : f32
      %51 = vector.broadcast %cst_28 : f32 to vector<16x32xf32>
      %c0_29 = arith.constant 0 : index
      %c0_30 = arith.constant 0 : index
      %52 = vector.load %arg9[%c0_29, %c0_30] : memref<16x32xf32, #tpu.memory_space<vmem>>, vector<16x32xf32>
      tpu.vector_store %arg9[%c0_29, %c0_30], %51 {strides = array<i32>} : memref<16x32xf32, #tpu.memory_space<vmem>>, vector<16x32xf32>,
    } else {
    }
    %c0 = arith.constant 0 : index
    %c0_1 = arith.constant 0 : index
    %3 = vector.load %arg10[%c0, %c0_1] : memref<16x32xf32, #tpu.memory_space<vmem>>, vector<16x32xf32>
    %4 = arith.truncf %3 : vector<16x32xf32> to vector<16x32xbf16>
    %c0_2 = arith.constant 0 : index
    %c0_3 = arith.constant 0 : index
    %5 = vector.load %arg3[%c0_2, %c0_3] : memref<32x16xbf16, #tpu.memory_space<vmem>>, vector<32x16xbf16>
    %cst = arith.constant dense<0.000000e+00> : vector<16x16xf32>
    %6 = tpu.matmul %4, %5, %cst {dimension_numbers = #tpu.dot_dimension_numbers<[1], [0], [0], [1], [0, 0, 1, 1], [], []>} : vector<16x32xbf16>, vector<32x16xbf16>, vector<16x16xf32> -> vector<16x16xf32>
    %c0_4 = arith.constant 0 : index
    %c0_5 = arith.constant 0 : index
    %7 = vector.load %arg4[%c0_4, %c0_5] : memref<1x16xf32, #tpu.memory_space<vmem>>, vector<1x16xf32>
    %8 = vector.broadcast %7 : vector<1x16xf32> to vector<16x16xf32>
    %9 = arith.addf %6, %8 : vector<16x16xf32>
    %cst_6 = arith.constant 0.000000e+00 : f32
    %10 = vector.broadcast %cst_6 : f32 to vector<16x16xf32>
    %11 = arith.cmpf oge, %9, %10 : vector<16x16xf32>
    %cst_7 = arith.constant 0.00999999977 : f32
    %12 = vector.broadcast %cst_7 : f32 to vector<16x16xf32>
    %13 = arith.mulf %12, %9 : vector<16x16xf32>
    %14 = arith.select %11, %9, %13 : vector<16x16xi1>, vector<16x16xf32>
    %15 = arith.truncf %14 : vector<16x16xf32> to vector<16x16xbf16>
    %c0_8 = arith.constant 0 : index
    %c0_9 = arith.constant 0 : index
    %16 = vector.load %arg9[%c0_8, %c0_9] : memref<16x32xf32, #tpu.memory_space<vmem>>, vector<16x32xf32>
    %c0_10 = arith.constant 0 : index
    %c0_11 = arith.constant 0 : index
    %17 = vector.load %arg5[%c0_10, %c0_11] : memref<16x32xbf16, #tpu.memory_space<vmem>>, vector<16x32xbf16>
    %cst_12 = arith.constant dense<0.000000e+00> : vector<16x32xf32>
    %18 = tpu.matmul %15, %17, %cst_12 {dimension_numbers = #tpu.dot_dimension_numbers<[1], [0], [0], [1], [0, 0, 1, 1], [], []>} : vector<16x16xbf16>, vector<16x32xbf16>, vector<16x32xf32> -> vector<16x32xf32>
    %19 = arith.addf %16, %18 : vector<16x32xf32>
    %c0_13 = arith.constant 0 : index
    %c0_14 = arith.constant 0 : index
    %20 = vector.load %arg9[%c0_13, %c0_14] : memref<16x32xf32, #tpu.memory_space<vmem>>, vector<16x32xf32>
    tpu.vector_store %arg9[%c0_13, %c0_14], %19 {strides = array<i32>} : memref<16x32xf32, #tpu.memory_space<vmem>>, vector<16x32xf32>,
    %c0_i32_15 = arith.constant 0 : i32
    %21 = arith.cmpi eq, %arg1, %c0_i32_15 : i32
    %22 = arith.extui %21 : i1 to i32
    %c0_i32_16 = arith.constant 0 : i32
    %23 = arith.cmpi ne, %22, %c0_i32_16 : i32
    scf.if %23 {
      %c0_17 = arith.constant 0 : index
      %c0_18 = arith.constant 0 : index
      %24 = vector.load %arg7[%c0_17, %c0_18] : memref<4x32xf32, #tpu.memory_space<vmem>>, vector<4x32xf32>
      %c0_19 = arith.constant 0 : index
      %c0_20 = arith.constant 0 : index
      %25 = vector.load %arg9[%c0_19, %c0_20] : memref<16x32xf32, #tpu.memory_space<vmem>>, vector<16x32xf32>
      %c0_21 = arith.constant 0 : index
      %c0_22 = arith.constant 0 : index
      %26 = vector.load %arg6[%c0_21, %c0_22] : memref<1x32xf32, #tpu.memory_space<vmem>>, vector<1x32xf32>
      %27 = vector.broadcast %26 : vector<1x32xf32> to vector<16x32xf32>
      %28 = arith.addf %25, %27 : vector<16x32xf32>
      %cst_23 = arith.constant 0.000000e+00 : f32
      %29 = vector.broadcast %cst_23 : f32 to vector<16x32xf32>
      %30 = arith.cmpf oge, %28, %29 : vector<16x32xf32>
      %cst_24 = arith.constant 0.00999999977 : f32
      %31 = vector.broadcast %cst_24 : f32 to vector<16x32xf32>
      %32 = arith.mulf %31, %28 : vector<16x32xf32>
      %33 = arith.select %30, %28, %32 : vector<16x32xi1>, vector<16x32xf32>
      %34 = vector.extract_strided_slice %24 {offsets = [2, 0], sizes = [1, 32], strides = [1, 1]} : vector<4x32xf32> to vector<1x32xf32>
      %35 = vector.extract_strided_slice %24 {offsets = [3, 0], sizes = [1, 32], strides = [1, 1]} : vector<4x32xf32> to vector<1x32xf32>
      %cst_25 = arith.constant dense<0.000000e+00> : vector<16xf32>
      %36 = vector.multi_reduction <add>, %33, %cst_25 [1] : vector<16x32xf32> to vector<16xf32>
      %37 = vector.shape_cast %36 : vector<16xf32> to vector<16x1xf32>
      %cst_26 = arith.constant 3.200000e+01 : f32
      %38 = vector.broadcast %cst_26 : f32 to vector<16x1xf32>
      %39 = arith.divf %37, %38 : vector<16x1xf32>
      %40 = vector.broadcast %39 : vector<16x1xf32> to vector<16x32xf32>
      %41 = arith.subf %33, %40 : vector<16x32xf32>
      %42 = arith.mulf %41, %41 : vector<16x32xf32>
      %cst_27 = arith.constant dense<0.000000e+00> : vector<16xf32>
      %43 = vector.multi_reduction <add>, %42, %cst_27 [1] : vector<16x32xf32> to vector<16xf32>
      %44 = vector.shape_cast %43 : vector<16xf32> to vector<16x1xf32>
      %cst_28 = arith.constant 3.200000e+01 : f32
      %45 = vector.broadcast %cst_28 : f32 to vector<16x1xf32>
      %46 = arith.divf %44, %45 : vector<16x1xf32>
      %47 = vector.broadcast %39 : vector<16x1xf32> to vector<16x32xf32>
      %48 = arith.subf %33, %47 : vector<16x32xf32>
      %cst_29 = arith.constant 9.99999974E-6 : f32
      %49 = vector.broadcast %cst_29 : f32 to vector<16x1xf32>
      %50 = arith.addf %46, %49 : vector<16x1xf32>
      %51 = math.rsqrt %50 : vector<16x1xf32>
      %52 = vector.broadcast %51 : vector<16x1xf32> to vector<16x32xf32>
      %53 = arith.mulf %48, %52 : vector<16x32xf32>
      %54 = vector.broadcast %34 : vector<1x32xf32> to vector<16x32xf32>
      %55 = arith.mulf %53, %54 : vector<16x32xf32>
      %56 = vector.broadcast %35 : vector<1x32xf32> to vector<16x32xf32>
      %57 = arith.addf %55, %56 : vector<16x32xf32>
      %c0_30 = arith.constant 0 : index
      %c0_31 = arith.constant 0 : index
      %58 = vector.load %arg8[%c0_30, %c0_31] : memref<16x32xf32, #tpu.memory_space<vmem>>, vector<16x32xf32>
      tpu.vector_store %arg8[%c0_30, %c0_31], %57 {strides = array<i32>} : memref<16x32xf32, #tpu.memory_space<vmem>>, vector<16x32xf32>,
    } else {
    }
    return
  }
  func.func @transform_0(%arg0: i32, %arg1: i32) -> (i32, i32) {
    %c0_i32 = arith.constant 0 : i32
    %c0_i32_0 = arith.constant 0 : i32
    return %arg0, %c0_i32 : i32, i32
  }
  func.func @transform_1(%arg0: i32, %arg1: i32) -> (i32, i32) {
    %c0_i32 = arith.constant 0 : i32
    %c0_i32_0 = arith.constant 0 : i32
    return %c0_i32, %arg1 : i32, i32
  }
  func.func @transform_2(%arg0: i32, %arg1: i32) -> (i32, i32) {
    %c0_i32 = arith.constant 0 : i32
    %c0_i32_0 = arith.constant 0 : i32
    return %c0_i32, %arg1 : i32, i32
  }
  func.func @transform_3(%arg0: i32, %arg1: i32) -> (i32, i32) {
    %c0_i32 = arith.constant 0 : i32
    %c0_i32_0 = arith.constant 0 : i32
    return %arg1, %c0_i32 : i32, i32
  }
  func.func @transform_4(%arg0: i32, %arg1: i32) -> (i32, i32) {
    %c0_i32 = arith.constant 0 : i32
    %c0_i32_0 = arith.constant 0 : i32
    %c0_i32_1 = arith.constant 0 : i32
    return %c0_i32, %c0_i32_0 : i32, i32
  }
  func.func @transform_5(%arg0: i32, %arg1: i32) -> (i32, i32) {
    %c0_i32 = arith.constant 0 : i32
    %c0_i32_0 = arith.constant 0 : i32
    %c0_i32_1 = arith.constant 0 : i32
    return %c0_i32, %c0_i32_0 : i32, i32
  }
  func.func @transform_6(%arg0: i32, %arg1: i32) -> (i32, i32) {
    %c0_i32 = arith.constant 0 : i32
    %c0_i32_0 = arith.constant 0 : i32
    return %arg0, %c0_i32 : i32, i32
  }
}

module attributes {stable_mosaic.version = 11 : i64} {
  func.func @ffn_kernel(%arg0: i32, %arg1: i32, %arg2: memref<16x32xf32, #tpu.memory_space<vmem>>, %arg3: memref<32x16xbf16, #tpu.memory_space<vmem>>, %arg4: memref<1x16xf32, #tpu.memory_space<vmem>>, %arg5: memref<16x32xbf16, #tpu.memory_space<vmem>>, %arg6: memref<1x32xf32, #tpu.memory_space<vmem>>, %arg7: memref<4x32xf32, #tpu.memory_space<vmem>>, %arg8: memref<16x32xf32, #tpu.memory_space<vmem>>, %arg9: memref<16x32xf32, #tpu.memory_space<vmem>>, %arg10: memref<16x32xf32, #tpu.memory_space<vmem>>) attributes {dimension_semantics = [#tpu.dimension_semantics<parallel>, #tpu.dimension_semantics<arbitrary>], iteration_bounds = array<i64: 1, 1>, scalar_prefetch = 0 : i64, scratch_operands = 2 : i64, tpu.core_type = #tpu.core_type<tc>, window_params = [{transform_indices = @transform_0, window_bounds = array<i64: 16, 32>}, {transform_indices = @transform_1, window_bounds = array<i64: 32, 16>}, {transform_indices = @transform_2, window_bounds = array<i64: 1, 16>}, {transform_indices = @transform_3, window_bounds = array<i64: 16, 32>}, {pipeline_mode = #tpu.pipeline_mode<synchronous>, transform_indices = @transform_4, window_bounds = array<i64: 1, 32>}, {pipeline_mode = #tpu.pipeline_mode<synchronous>, transform_indices = @transform_5, window_bounds = array<i64: 4, 32>}, {transform_indices = @transform_6, window_bounds = array<i64: 16, 32>}]} {
    %c0_i32 = arith.constant 0 : i32
    %0 = arith.cmpi eq, %arg1, %c0_i32 : i32
    %1 = arith.extui %0 : i1 to i32
    %c0_i32_0 = arith.constant 0 : i32
    %2 = arith.cmpi ne, %1, %c0_i32_0 : i32
    scf.if %2 {
      %c0_17 = arith.constant 0 : index
      %c0_18 = arith.constant 0 : index
      %24 = vector.load %arg7[%c0_17, %c0_18] : memref<4x32xf32, #tpu.memory_space<vmem>>, vector<4x32xf32>
      %c0_19 = arith.constant 0 : index
      %c0_20 = arith.constant 0 : index
      %25 = vector.load %arg2[%c0_19, %c0_20] : memref<16x32xf32, #tpu.memory_space<vmem>>, vector<16x32xf32>
      %26 = vector.extract_strided_slice %24 {offsets = [0, 0], sizes = [1, 32], strides = [1, 1]} : vector<4x32xf32> to vector<1x32xf32>
      %27 = vector.extract_strided_slice %24 {offsets = [1, 0], sizes = [1, 32], strides = [1, 1]} : vector<4x32xf32> to vector<1x32xf32>
      %cst_21 = arith.constant dense<0.000000e+00> : vector<16xf32>
      %28 = vector.multi_reduction <add>, %25, %cst_21 [1] : vector<16x32xf32> to vector<16xf32>
      %29 = vector.shape_cast %28 : vector<16xf32> to vector<16x1xf32>
      %cst_22 = arith.constant 3.200000e+01 : f32
      %30 = vector.broadcast %cst_22 : f32 to vector<16x1xf32>
      %31 = arith.divf %29, %30 : vector<16x1xf32>
      %32 = vector.broadcast %31 : vector<16x1xf32> to vector<16x32xf32>
      %33 = arith.subf %25, %32 : vector<16x32xf32>
      %34 = arith.mulf %33, %33 : vector<16x32xf32>
      %cst_23 = arith.constant dense<0.000000e+00> : vector<16xf32>
      %35 = vector.multi_reduction <add>, %34, %cst_23 [1] : vector<16x32xf32> to vector<16xf32>
      %36 = vector.shape_cast %35 : vector<16xf32> to vector<16x1xf32>
      %cst_24 = arith.constant 3.200000e+01 : f32
      %37 = vector.broadcast %cst_24 : f32 to vector<16x1xf32>
      %38 = arith.divf %36, %37 : vector<16x1xf32>
      %39 = vector.broadcast %31 : vector<16x1xf32> to vector<16x32xf32>
      %40 = arith.subf %25, %39 : vector<16x32xf32>
      %cst_25 = arith.constant 9.99999974E-6 : f32
      %41 = vector.broadcast %cst_25 : f32 to vector<16x1xf32>
      %42 = arith.addf %38, %41 : vector<16x1xf32>
      %43 = math.rsqrt %42 : vector<16x1xf32>
      %44 = vector.broadcast %43 : vector<16x1xf32> to vector<16x32xf32>
      %45 = arith.mulf %40, %44 : vector<16x32xf32>
      %46 = vector.broadcast %26 : vector<1x32xf32> to vector<16x32xf32>
      %47 = arith.mulf %45, %46 : vector<16x32xf32>
      %48 = vector.broadcast %27 : vector<1x32xf32> to vector<16x32xf32>
      %49 = arith.addf %47, %48 : vector<16x32xf32>
      %c0_26 = arith.constant 0 : index
      %c0_27 = arith.constant 0 : index
      %50 = vector.load %arg10[%c0_26, %c0_27] : memref<16x32xf32, #tpu.memory_space<vmem>>, vector<16x32xf32>
      tpu.vector_store %arg10[%c0_26, %c0_27], %49 {strides = array<i32>} : memref<16x32xf32, #tpu.memory_space<vmem>>, vector<16x32xf32>,
      %cst_28 = arith.constant 0.000000e+00 : f32
      %51 = vector.broadcast %cst_28 : f32 to vector<16x32xf32>
      %c0_29 = arith.constant 0 : index
      %c0_30 = arith.constant 0 : index
      %52 = vector.load %arg9[%c0_29, %c0_30] : memref<16x32xf32, #tpu.memory_space<vmem>>, vector<16x32xf32>
      tpu.vector_store %arg9[%c0_29, %c0_30], %51 {strides = array<i32>} : memref<16x32xf32, #tpu.memory_space<vmem>>, vector<16x32xf32>,
    } else {
    }
    %c0 = arith.constant 0 : index
    %c0_1 = arith.constant 0 : index
    %3 = vector.load %arg10[%c0, %c0_1] : memref<16x32xf32, #tpu.memory_space<vmem>>, vector<16x32xf32>
    %4 = arith.truncf %3 : vector<16x32xf32> to vector<16x32xbf16>
    %c0_2 = arith.constant 0 : index
    %c0_3 = arith.constant 0 : index
    %5 = vector.load %arg3[%c0_2, %c0_3] : memref<32x16xbf16, #tpu.memory_space<vmem>>, vector<32x16xbf16>
    %cst = arith.constant dense<0.000000e+00> : vector<16x16xf32>
    %6 = tpu.matmul %4, %5, %cst {dimension_numbers = #tpu.dot_dimension_numbers<[1], [0], [0], [1], [0, 0, 1, 1], [], []>} : vector<16x32xbf16>, vector<32x16xbf16>, vector<16x16xf32> -> vector<16x16xf32>
    %c0_4 = arith.constant 0 : index
    %c0_5 = arith.constant 0 : index
    %7 = vector.load %arg4[%c0_4, %c0_5] : memref<1x16xf32, #tpu.memory_space<vmem>>, vector<1x16xf32>
    %8 = vector.broadcast %7 : vector<1x16xf32> to vector<16x16xf32>
    %9 = arith.addf %6, %8 : vector<16x16xf32>
    %cst_6 = arith.constant 0.000000e+00 : f32
    %10 = vector.broadcast %cst_6 : f32 to vector<16x16xf32>
    %11 = arith.cmpf oge, %9, %10 : vector<16x16xf32>
    %cst_7 = arith.constant 0.00999999977 : f32
    %12 = vector.broadcast %cst_7 : f32 to vector<16x16xf32>
    %13 = arith.mulf %12, %9 : vector<16x16xf32>
    %14 = arith.select %11, %9, %13 : vector<16x16xi1>, vector<16x16xf32>
    %15 = arith.truncf %14 : vector<16x16xf32> to vector<16x16xbf16>
    %c0_8 = arith.constant 0 : index
    %c0_9 = arith.constant 0 : index
    %16 = vector.load %arg9[%c0_8, %c0_9] : memref<16x32xf32, #tpu.memory_space<vmem>>, vector<16x32xf32>
    %c0_10 = arith.constant 0 : index
    %c0_11 = arith.constant 0 : index
    %17 = vector.load %arg5[%c0_10, %c0_11] : memref<16x32xbf16, #tpu.memory_space<vmem>>, vector<16x32xbf16>
    %cst_12 = arith.constant dense<0.000000e+00> : vector<16x32xf32>
    %18 = tpu.matmul %15, %17, %cst_12 {dimension_numbers = #tpu.dot_dimension_numbers<[1], [0], [0], [1], [0, 0, 1, 1], [], []>} : vector<16x16xbf16>, vector<16x32xbf16>, vector<16x32xf32> -> vector<16x32xf32>
    %19 = arith.addf %16, %18 : vector<16x32xf32>
    %c0_13 = arith.constant 0 : index
    %c0_14 = arith.constant 0 : index
    %20 = vector.load %arg9[%c0_13, %c0_14] : memref<16x32xf32, #tpu.memory_space<vmem>>, vector<16x32xf32>
    tpu.vector_store %arg9[%c0_13, %c0_14], %19 {strides = array<i32>} : memref<16x32xf32, #tpu.memory_space<vmem>>, vector<16x32xf32>,
    %c0_i32_15 = arith.constant 0 : i32
    %21 = arith.cmpi eq, %arg1, %c0_i32_15 : i32
    %22 = arith.extui %21 : i1 to i32
    %c0_i32_16 = arith.constant 0 : i32
    %23 = arith.cmpi ne, %22, %c0_i32_16 : i32
    scf.if %23 {
      %c0_17 = arith.constant 0 : index
      %c0_18 = arith.constant 0 : index
      %24 = vector.load %arg7[%c0_17, %c0_18] : memref<4x32xf32, #tpu.memory_space<vmem>>, vector<4x32xf32>
      %c0_19 = arith.constant 0 : index
      %c0_20 = arith.constant 0 : index
      %25 = vector.load %arg9[%c0_19, %c0_20] : memref<16x32xf32, #tpu.memory_space<vmem>>, vector<16x32xf32>
      %c0_21 = arith.constant 0 : index
      %c0_22 = arith.constant 0 : index
      %26 = vector.load %arg6[%c0_21, %c0_22] : memref<1x32xf32, #tpu.memory_space<vmem>>, vector<1x32xf32>
      %27 = vector.broadcast %26 : vector<1x32xf32> to vector<16x32xf32>
      %28 = arith.addf %25, %27 : vector<16x32xf32>
      %cst_23 = arith.constant 0.000000e+00 : f32
      %29 = vector.broadcast %cst_23 : f32 to vector<16x32xf32>
      %30 = arith.cmpf oge, %28, %29 : vector<16x32xf32>
      %cst_24 = arith.constant 0.00999999977 : f32
      %31 = vector.broadcast %cst_24 : f32 to vector<16x32xf32>
      %32 = arith.mulf %31, %28 : vector<16x32xf32>
      %33 = arith.select %30, %28, %32 : vector<16x32xi1>, vector<16x32xf32>
      %34 = vector.extract_strided_slice %24 {offsets = [2, 0], sizes = [1, 32], strides = [1, 1]} : vector<4x32xf32> to vector<1x32xf32>
      %35 = vector.extract_strided_slice %24 {offsets = [3, 0], sizes = [1, 32], strides = [1, 1]} : vector<4x32xf32> to vector<1x32xf32>
      %cst_25 = arith.constant dense<0.000000e+00> : vector<16xf32>
      %36 = vector.multi_reduction <add>, %33, %cst_25 [1] : vector<16x32xf32> to vector<16xf32>
      %37 = vector.shape_cast %36 : vector<16xf32> to vector<16x1xf32>
      %cst_26 = arith.constant 3.200000e+01 : f32
      %38 = vector.broadcast %cst_26 : f32 to vector<16x1xf32>
      %39 = arith.divf %37, %38 : vector<16x1xf32>
      %40 = vector.broadcast %39 : vector<16x1xf32> to vector<16x32xf32>
      %41 = arith.subf %33, %40 : vector<16x32xf32>
      %42 = arith.mulf %41, %41 : vector<16x32xf32>
      %cst_27 = arith.constant dense<0.000000e+00> : vector<16xf32>
      %43 = vector.multi_reduction <add>, %42, %cst_27 [1] : vector<16x32xf32> to vector<16xf32>
      %44 = vector.shape_cast %43 : vector<16xf32> to vector<16x1xf32>
      %cst_28 = arith.constant 3.200000e+01 : f32
      %45 = vector.broadcast %cst_28 : f32 to vector<16x1xf32>
      %46 = arith.divf %44, %45 : vector<16x1xf32>
      %47 = vector.broadcast %39 : vector<16x1xf32> to vector<16x32xf32>
      %48 = arith.subf %33, %47 : vector<16x32xf32>
      %cst_29 = arith.constant 9.99999974E-6 : f32
      %49 = vector.broadcast %cst_29 : f32 to vector<16x1xf32>
      %50 = arith.addf %46, %49 : vector<16x1xf32>
      %51 = math.rsqrt %50 : vector<16x1xf32>
      %52 = vector.broadcast %51 : vector<16x1xf32> to vector<16x32xf32>
      %53 = arith.mulf %48, %52 : vector<16x32xf32>
      %54 = vector.broadcast %34 : vector<1x32xf32> to vector<16x32xf32>
      %55 = arith.mulf %53, %54 : vector<16x32xf32>
      %56 = vector.broadcast %35 : vector<1x32xf32> to vector<16x32xf32>
      %57 = arith.addf %55, %56 : vector<16x32xf32>
      %c0_30 = arith.constant 0 : index
      %c0_31 = arith.constant 0 : index
      %58 = vector.load %arg8[%c0_30, %c0_31] : memref<16x32xf32, #tpu.memory_space<vmem>>, vector<16x32xf32>
      tpu.vector_store %arg8[%c0_30, %c0_31], %57 {strides = array<i32>} : memref<16x32xf32, #tpu.memory_space<vmem>>, vector<16x32xf32>,
    } else {
    }
    return
  }
  func.func @transform_0(%arg0: i32, %arg1: i32) -> (i32, i32) {
    %c0_i32 = arith.constant 0 : i32
    %c0_i32_0 = arith.constant 0 : i32
    return %arg0, %c0_i32 : i32, i32
  }
  func.func @transform_1(%arg0: i32, %arg1: i32) -> (i32, i32) {
    %c0_i32 = arith.constant 0 : i32
    %c0_i32_0 = arith.constant 0 : i32
    return %c0_i32, %arg1 : i32, i32
  }
  func.func @transform_2(%arg0: i32, %arg1: i32) -> (i32, i32) {
    %c0_i32 = arith.constant 0 : i32
    %c0_i32_0 = arith.constant 0 : i32
    return %c0_i32, %arg1 : i32, i32
  }
  func.func @transform_3(%arg0: i32, %arg1: i32) -> (i32, i32) {
    %c0_i32 = arith.constant 0 : i32
    %c0_i32_0 = arith.constant 0 : i32
    return %arg1, %c0_i32 : i32, i32
  }
  func.func @transform_4(%arg0: i32, %arg1: i32) -> (i32, i32) {
    %c0_i32 = arith.constant 0 : i32
    %c0_i32_0 = arith.constant 0 : i32
    %c0_i32_1 = arith.constant 0 : i32
    return %c0_i32, %c0_i32_0 : i32, i32
  }
  func.func @transform_5(%arg0: i32, %arg1: i32) -> (i32, i32) {
    %c0_i32 = arith.constant 0 : i32
    %c0_i32_0 = arith.constant 0 : i32
    %c0_i32_1 = arith.constant 0 : i32
    return %c0_i32, %c0_i32_0 : i32, i32
  }
  func.func @transform_6(%arg0: i32, %arg1: i32) -> (i32, i32) {
    %c0_i32 = arith.constant 0 : i32
    %c0_i32_0 = arith.constant 0 : i32
    return %arg0, %c0_i32 : i32, i32
  }
}

</mosaic_0001>

<llo_original>
// kernel: _ffn_forward.1
$region0: #{_ffn_forward.1}
  #allocation0 [shape = 'u32[]', space=smem, size = 0x4, offset = 0x4, fixed_abs, tag = 'smem constant byte address 0x4 - core index']
  #allocation1 [shape = 'u32[144,128]{1,0:T(1,128)}', space=vmem, size = 0x12000, scoped, tag = 'internal scratch']
  #allocation2 [shape = 'f32[16,32]{1,0:T(8,128)}', space=vmem, size = 0x2000, scoped, tag = 'scratch operand']
  #allocation3 [shape = 'f32[16,32]{1,0:T(8,128)}', space=vmem, size = 0x2000, scoped, tag = 'scratch operand']
  %s0 = inlined_call_operand.vmem [shape: f32[16,32], index: 0, kind: input, shape index: {}]
  %s1 = inlined_call_operand.vmem [shape: bf16[32,16], index: 1, kind: input, shape index: {}]
  %s2 = inlined_call_operand.vmem [shape: f32[1,16], index: 2, kind: input, shape index: {}]
  %s3 = inlined_call_operand.vmem [shape: bf16[16,32], index: 3, kind: input, shape index: {}]
  %s4 = inlined_call_operand.vmem [shape: f32[1,32], index: 4, kind: input, shape index: {}]
  %s5 = inlined_call_operand.vmem [shape: f32[4,32], index: 5, kind: input, shape index: {}]
  %s6 = inlined_call_operand.hbm [shape: f32[16,32], index: 6, kind: output, shape index: {}]
  %s7 = sld [smem:[#allocation0]]
  $region42: #{_ffn_forward.1} parent=0
    _
  %s9 = ssub.s32 1, %s7
  %s10 = scalar_select 0, %s9, %s7
  $region1: #{_ffn_forward.1} parent=0
    #allocation4 [shape = 'u8[8192]{0}', space=vmem, size = 0x2000, scoped, tag = 'output window, operand 0, single buffered']
    #allocation5 [shape = 's32[1]{0}', space=sflag, size = 0x4, scoped, tag = 'scoped memory for _ffn_forward.1']
    %11 = vsyncpa [#allocation5], 0
    // Predicated region
    $region2: #{_ffn_forward.1} parent=1 // pred_check
      _
    $region3: #{_ffn_forward.1} parent=1 // pred_check_branch
      %13 = sbr.rel (0) target = $region5
    $region4: #{_ffn_forward.1} parent=1 // pred_region
      _
    $region5: #{_ffn_forward.1} parent=1 // pred_fallthru
      _
    // Predicated region
    $region6: #{_ffn_forward.1} parent=1 // pred_check
      _
    $region7: #{_ffn_forward.1} parent=1 // pred_check_branch
      %15 = sbr.rel (0) target = $region9
    $region8: #{_ffn_forward.1} parent=1 // pred_region
      _
    $region9: #{_ffn_forward.1} parent=1 // pred_fallthru
      _
    // Predicated region
    $region10: #{_ffn_forward.1} parent=1 // pred_check
      _
    $region11: #{_ffn_forward.1} parent=1 // pred_check_branch
      %17 = sbr.rel (0) target = $region13
    $region12: #{_ffn_forward.1} parent=1 // pred_region
      _
    $region13: #{_ffn_forward.1} parent=1 // pred_fallthru
      _
    // Predicated region
    $region14: #{_ffn_forward.1} parent=1 // pred_check
      _
    $region15: #{_ffn_forward.1} parent=1 // pred_check_branch
      %19 = sbr.rel (0) target = $region17
    $region16: #{_ffn_forward.1} parent=1 // pred_region
      _
    $region17: #{_ffn_forward.1} parent=1 // pred_fallthru
      _
    // Predicated region
    $region18: #{_ffn_forward.1} parent=1 // pred_check
      _
    $region19: #{_ffn_forward.1} parent=1 // pred_check_branch
      %21 = sbr.rel (0) target = $region21
    $region20: #{_ffn_forward.1} parent=1 // pred_region
      _
    $region21: #{_ffn_forward.1} parent=1 // pred_fallthru
      _
    // Predicated region
    $region22: #{_ffn_forward.1} parent=1 // pred_check
      _
    $region23: #{_ffn_forward.1} parent=1 // pred_check_branch
      %23 = sbr.rel (0) target = $region25
    $region24: #{_ffn_forward.1} parent=1 // pred_region
      _
    $region25: #{_ffn_forward.1} parent=1 // pred_fallthru
      _
    %p25 = scmp.eq.s32.totalorder 0, 0
    // Predicated region
    $region26: #{_ffn_forward.1} parent=1 // pred_check
      %p26 = pneg %p25
    $region27: #{_ffn_forward.1} parent=1 // pred_check_branch
      %28 = sbr.rel (%p26) target = $region29
    $region28: #{_ffn_forward.1} parent=1 // pred_region
      %v29 = vld [vmem:[%s5] sm:$0xf]
      %v30 = vld [vmem:[%s0] sm:$0xff]
      %v31 = vld [vmem:[%s0 + $0x8] sm:$0xff]
      %vm32 = vcmask 261120
      %v33 = vsel %vm32, %v30, 0.0
      %34 = vadd.xlane.f32.xlu0 %v33
      %v35 = vpop.xlane.xlu0 %34
      %v36 = vsel %vm32, %v31, 0.0
      %37 = vadd.xlane.f32.xlu0 %v36
      %v38 = vpop.xlane.xlu0 %37
      %v39 = vrcp.pop 32.0
      %v40 = vmul.f32 %v35, %v39
      %v41 = vmul.f32 %v38, %v39
      %v42 = vsub.f32 %v30, %v40
      %v43 = vsub.f32 %v31, %v41
      %v44 = vmul.f32 %v42, %v42
      %v45 = vmul.f32 %v43, %v43
      %v46 = vsel %vm32, %v44, 0.0
      %47 = vadd.xlane.f32.xlu0 %v46
      %v48 = vpop.xlane.xlu0 %47
      %v49 = vsel %vm32, %v45, 0.0
      %50 = vadd.xlane.f32.xlu0 %v49
      %v51 = vpop.xlane.xlu0 %50
      %v52 = vmul.f32 %v48, %v39
      %v53 = vmul.f32 %v51, %v39
      %v54 = vadd.f32 %v52, 1e-05
      %v55 = vadd.f32 %v53, 1e-05
      %v56 = vrsqrt.pop %v54
      %v57 = vrsqrt.pop %v55
      %v58 = vmul.f32 %v42, %v56
      %v59 = vmul.f32 %v43, %v57
      %v60 = vlaneseq
      %v61 = vshrl.u32 %v60, 7
      %v62 = vsub.s32 0, %v61
      %v63 = vrot.slane %v29, %v62
      %v64 = vmul.f32 %v58, %v63
      %v65 = vmul.f32 %v59, %v63
      %v66 = vlaneseq
      %v67 = vshrl.u32 %v66, 7
      %v68 = vsub.s32 1, %v67
      %v69 = vrot.slane %v29, %v68
      %v70 = vadd.f32 %v64, %v69
      %v71 = vadd.f32 %v65, %v69
      %72 = vst.msk [vmem:[#allocation3] sm:$0xff] %vm32, %v70
      %73 = vst.msk [vmem:[#allocation3 + $0x8] sm:$0xff] %vm32, %v71
      %74 = vst.msk [vmem:[#allocation2] sm:$0xff] %vm32, 0.0
      %75 = vst.msk [vmem:[#allocation2 + $0x8] sm:$0xff] %vm32, 0.0
    $region29: #{_ffn_forward.1} parent=1 // pred_fallthru
      _
    %v76 = vld [vmem:[#allocation3] sm:$0xff]
    %v77 = vld [vmem:[#allocation3 + $0x8] sm:$0xff]
    %v78 = vpack.c.bf16 %v77, %v76
    %v79 = vld [vmem:[%s1] sm:$0xf]
    %v80 = vld [vmem:[%s1 + $0x4] sm:$0xf]
    %v81 = vld [vmem:[%s1 + $0x8] sm:$0xf]
    %v82 = vld [vmem:[%s1 + $0xc] sm:$0xf]
    %v83 = vld [vmem:[%s2] sm:$0x1]
    %v85 = vlaneseq
    %v86 = vshrl.u32 %v85, 7
    %v87 = vsub.s32 0, %v86
    %v88 = vrot.slane %v83, %v87
    %v94 = vunpack.c.l.b16 %v79
    %v95 = vunpack.c.l.b16 %v80
    %v96 = vunpack.c.l.b16 %v81
    %v97 = vunpack.c.l.b16 %v82
    %v98 = vpack.c.b16 %v95, %v94
    %v99 = vpack.c.b16 %v97, %v96
    %vm102 = vcmask 261120
    %v104 = vsel %vm102, %v78, 0
    %106 = vmatprep.subr.bf16.mxu0 0
    %107 = vmatpush1.bf16.msra.mxu0 0
    %108 = vmatprep.subr.bf16.mxu0 0
    %109 = vmatpush1.bf16.msra.mxu0 0
    %110 = vmatprep.subr.bf16.mxu0 0
    %111 = vmatpush1.bf16.msra.mxu0 0
    %112 = vmatprep.subr.bf16.mxu0 0
    %113 = vmatpush1.bf16.msra.mxu0 0
    %114 = vmatprep.subr.bf16.mxu0 0
    %115 = vmatpush1.bf16.msra.mxu0 0
    %116 = vmatprep.subr.bf16.mxu0 0
    %117 = vmatpush1.bf16.msra.mxu0 0
    %118 = vmatprep.subr.bf16.mxu0 0
    %119 = vmatpush1.bf16.msra.mxu0 %v99
    %120 = vmatprep.subr.bf16.mxu0 0
    %121 = vmatpush1.bf16.msra.mxu0 %v98
    %122 = vmatprep.subr.bf16.mxu0 0
    %123 = vmatpush2.bf16.msra.mxu0 0
    %124 = vmatprep.subr.bf16.mxu0 0
    %125 = vmatpush2.bf16.msra.mxu0 0
    %126 = vmatprep.subr.bf16.mxu0 0
    %127 = vmatpush2.bf16.msra.mxu0 0
    %128 = vmatprep.subr.bf16.mxu0 0
    %129 = vmatpush2.bf16.msra.mxu0 0
    %130 = vmatprep.subr.bf16.mxu0 0
    %131 = vmatpush2.bf16.msra.mxu0 0
    %132 = vmatprep.subr.bf16.mxu0 0
    %133 = vmatpush2.bf16.msra.mxu0 0
    %134 = vmatprep.subr.bf16.mxu0 0
    %135 = vmatpush2.bf16.msra.mxu0 0
    %136 = vmatprep.subr.bf16.mxu0 0
    %137 = vmatpush2.bf16.msra.mxu0 0
    %138 = vmatprep.mubr.bf16.mxu0 0
    %139 = vmatmul.mubr.bf16.gmra.mxu0 %v104
    %v140 = vpop.f32.mrf.mxu0
    %v141 = vadd.f32 %v88, %v140
    %v142 = vpop.f32.mrf.mxu0
    %v143 = vpop.f32.mrf.mxu0
    %v144 = vadd.f32 %v88, %v143
    %v145 = vpop.f32.mrf.mxu0
    %146 = vdwg.mxu0
    %vm147 = vcmp.ge.f32.partialorder %v141, 0.0
    %vm148 = vcmp.ge.f32.partialorder %v144, 0.0
    %v149 = vmul.f32 %v141, 0.01
    %v150 = vmul.f32 %v144, 0.01
    %v151 = vsel %vm147, %v141, %v149
    %v152 = vsel %vm148, %v144, %v150
    %v153 = vpack.c.bf16 %v152, %v151
    %v154 = vld [vmem:[#allocation2] sm:$0xff]
    %v155 = vld [vmem:[#allocation2 + $0x8] sm:$0xff]
    %v156 = vld [vmem:[%s3] sm:$0xf]
    %v157 = vld [vmem:[%s3 + $0x4] sm:$0xf]
    %v160 = vunpack.c.l.b16 %v156
    %v161 = vunpack.c.l.b16 %v157
    %v162 = vpack.c.b16 %v161, %v160
    %vm164 = vcmask 130048
    %v166 = vsel %vm164, %v153, 0
    %168 = vmatprep.subr.bf16.mxu0 0
    %169 = vmatpush1.bf16.msra.mxu0 0
    %170 = vmatprep.subr.bf16.mxu0 0
    %171 = vmatpush1.bf16.msra.mxu0 0
    %172 = vmatprep.subr.bf16.mxu0 0
    %173 = vmatpush1.bf16.msra.mxu0 0
    %174 = vmatprep.subr.bf16.mxu0 0
    %175 = vmatpush1.bf16.msra.mxu0 0
    %176 = vmatprep.subr.bf16.mxu0 0
    %177 = vmatpush1.bf16.msra.mxu0 0
    %178 = vmatprep.subr.bf16.mxu0 0
    %179 = vmatpush1.bf16.msra.mxu0 0
    %180 = vmatprep.subr.bf16.mxu0 0
    %181 = vmatpush1.bf16.msra.mxu0 0
    %182 = vmatprep.subr.bf16.mxu0 0
    %183 = vmatpush1.bf16.msra.mxu0 %v162
    %184 = vmatprep.subr.bf16.mxu0 0
    %185 = vmatpush2.bf16.msra.mxu0 0
    %186 = vmatprep.subr.bf16.mxu0 0
    %187 = vmatpush2.bf16.msra.mxu0 0
    %188 = vmatprep.subr.bf16.mxu0 0
    %189 = vmatpush2.bf16.msra.mxu0 0
    %190 = vmatprep.subr.bf16.mxu0 0
    %191 = vmatpush2.bf16.msra.mxu0 0
    %192 = vmatprep.subr.bf16.mxu0 0
    %193 = vmatpush2.bf16.msra.mxu0 0
    %194 = vmatprep.subr.bf16.mxu0 0
    %195 = vmatpush2.bf16.msra.mxu0 0
    %196 = vmatprep.subr.bf16.mxu0 0
    %197 = vmatpush2.bf16.msra.mxu0 0
    %198 = vmatprep.subr.bf16.mxu0 0
    %199 = vmatpush2.bf16.msra.mxu0 0
    %200 = vmatprep.mubr.bf16.mxu0 0
    %201 = vmatmul.mubr.bf16.gmra.mxu0 %v166
    %v202 = vpop.f32.mrf.mxu0
    %v203 = vadd.f32 0.0, %v202
    %v204 = vpop.f32.mrf.mxu0
    %v205 = vpop.f32.mrf.mxu0
    %v206 = vadd.f32 0.0, %v205
    %v207 = vpop.f32.mrf.mxu0
    %208 = vdwg.mxu0
    %v209 = vadd.f32 %v154, %v203
    %v210 = vadd.f32 %v155, %v206
    %211 = vst.msk [vmem:[#allocation2] sm:$0xff] %vm102, %v209
    %212 = vst.msk [vmem:[#allocation2 + $0x8] sm:$0xff] %vm102, %v210
    // Predicated region
    $region30: #{_ffn_forward.1} parent=1 // pred_check
      %p213 = pneg %p25
    $region31: #{_ffn_forward.1} parent=1 // pred_check_branch
      %215 = sbr.rel (%p213) target = $region33
    $region32: #{_ffn_forward.1} parent=1 // pred_region
      %v216 = vld [vmem:[%s5] sm:$0xf]
      %v217 = vld [vmem:[#allocation2] sm:$0xff]
      %v218 = vld [vmem:[#allocation2 + $0x8] sm:$0xff]
      %v219 = vld [vmem:[%s4] sm:$0x1]
      %v221 = vlaneseq
      %v222 = vshrl.u32 %v221, 7
      %v223 = vsub.s32 0, %v222
      %v224 = vrot.slane %v219, %v223
      %v226 = vadd.f32 %v217, %v224
      %v227 = vadd.f32 %v218, %v224
      %vm228 = vcmp.ge.f32.partialorder %v226, 0.0
      %vm229 = vcmp.ge.f32.partialorder %v227, 0.0
      %v230 = vmul.f32 %v226, 0.01
      %v231 = vmul.f32 %v227, 0.01
      %v232 = vsel %vm228, %v226, %v230
      %v233 = vsel %vm229, %v227, %v231
      %v234 = vsel %vm102, %v232, 0.0
      %235 = vadd.xlane.f32.xlu0 %v234
      %v236 = vpop.xlane.xlu0 %235
      %v237 = vsel %vm102, %v233, 0.0
      %238 = vadd.xlane.f32.xlu0 %v237
      %v239 = vpop.xlane.xlu0 %238
      %v240 = vrcp.pop 32.0
      %v241 = vmul.f32 %v236, %v240
      %v242 = vmul.f32 %v239, %v240
      %v243 = vsub.f32 %v232, %v241
      %v244 = vsub.f32 %v233, %v242
      %v245 = vmul.f32 %v243, %v243
      %v246 = vmul.f32 %v244, %v244
      %v247 = vsel %vm102, %v245, 0.0
      %248 = vadd.xlane.f32.xlu0 %v247
      %v249 = vpop.xlane.xlu0 %248
      %v250 = vsel %vm102, %v246, 0.0
      %251 = vadd.xlane.f32.xlu0 %v250
      %v252 = vpop.xlane.xlu0 %251
      %v253 = vmul.f32 %v249, %v240
      %v254 = vmul.f32 %v252, %v240
      %v255 = vadd.f32 %v253, 1e-05
      %v256 = vadd.f32 %v254, 1e-05
      %v257 = vrsqrt.pop %v255
      %v258 = vrsqrt.pop %v256
      %v259 = vmul.f32 %v243, %v257
      %v260 = vmul.f32 %v244, %v258
      %v261 = vlaneseq
      %v262 = vshrl.u32 %v261, 7
      %v263 = vsub.s32 2, %v262
      %v264 = vrot.slane %v216, %v263
      %v265 = vmul.f32 %v259, %v264
      %v266 = vmul.f32 %v260, %v264
      %v267 = vlaneseq
      %v268 = vshrl.u32 %v267, 7
      %v269 = vsub.s32 3, %v268
      %v270 = vrot.slane %v216, %v269
      %v271 = vadd.f32 %v265, %v270
      %v272 = vadd.f32 %v266, %v270
      %273 = vst.msk [vmem:[#allocation4] sm:$0xff] %vm102, %v271
      %274 = vst.msk [vmem:[#allocation4 + $0x8] sm:$0xff] %vm102, %v272
    $region33: #{_ffn_forward.1} parent=1 // pred_fallthru
      _
    // Predicated region
    $region34: #{_ffn_forward.1} parent=1 // pred_check
      _
    $region35: #{_ffn_forward.1} parent=1 // pred_check_branch
      %276 = sbr.rel (0) target = $region37
    $region36: #{_ffn_forward.1} parent=1 // pred_region
      %s278 = ssub.s32 256, 256
      %279 = vsyncadd [#allocation5], %s278
      %s280 = sshll.u32 [#allocation4], 4
      %s281 = int_to_ptr.vmem [resolvable:$true] %s280
      %286 = dma.vmem_to_hbm [thread:$0]  %s281, 256, %s6, [#allocation5], 128, 128, 8
    $region37: #{_ffn_forward.1} parent=1 // pred_fallthru
      _
    // Predicated region
    $region38: #{_ffn_forward.1} parent=1 // pred_check
      _
    $region39: #{_ffn_forward.1} parent=1 // pred_check_branch
      %288 = sbr.rel (0) target = $region41
    $region40: #{_ffn_forward.1} parent=1 // pred_region
      %289 = dma.done [#allocation5], 256
    $region41: #{_ffn_forward.1} parent=1 // pred_fallthru
      _
    %290 = vsyncpa [#allocation5], 1

// kernel: _ffn_forward.1
$region0: #{_ffn_forward.1}
  #allocation0 [shape = 'u32[]', space=smem, size = 0x4, offset = 0x4, fixed_abs, tag = 'smem constant byte address 0x4 - core index']
  #allocation1 [shape = 'u32[144,128]{1,0:T(1,128)}', space=vmem, size = 0x12000, scoped, tag = 'internal scratch']
  #allocation2 [shape = 'f32[16,32]{1,0:T(8,128)}', space=vmem, size = 0x2000, scoped, tag = 'scratch operand']
  #allocation3 [shape = 'f32[16,32]{1,0:T(8,128)}', space=vmem, size = 0x2000, scoped, tag = 'scratch operand']
  %s0 = inlined_call_operand.vmem [shape: f32[16,32], index: 0, kind: input, shape index: {}]
  %s1 = inlined_call_operand.vmem [shape: bf16[32,16], index: 1, kind: input, shape index: {}]
  %s2 = inlined_call_operand.vmem [shape: f32[1,16], index: 2, kind: input, shape index: {}]
  %s3 = inlined_call_operand.vmem [shape: bf16[16,32], index: 3, kind: input, shape index: {}]
  %s4 = inlined_call_operand.vmem [shape: f32[1,32], index: 4, kind: input, shape index: {}]
  %s5 = inlined_call_operand.vmem [shape: f32[4,32], index: 5, kind: input, shape index: {}]
  %s6 = inlined_call_operand.hbm [shape: f32[16,32], index: 6, kind: output, shape index: {}]
  %s7 = sld [smem:[#allocation0]]
  $region42: #{_ffn_forward.1} parent=0
    _
  %s9 = ssub.s32 1, %s7
  %s10 = scalar_select 0, %s9, %s7
  $region1: #{_ffn_forward.1} parent=0
    #allocation4 [shape = 'u8[8192]{0}', space=vmem, size = 0x2000, scoped, tag = 'output window, operand 0, single buffered']
    #allocation5 [shape = 's32[1]{0}', space=sflag, size = 0x4, scoped, tag = 'scoped memory for _ffn_forward.1']
    %11 = vsyncpa [#allocation5], 0
    // Predicated region
    $region2: #{_ffn_forward.1} parent=1 // pred_check
      _
    $region3: #{_ffn_forward.1} parent=1 // pred_check_branch
      %13 = sbr.rel (0) target = $region5
    $region4: #{_ffn_forward.1} parent=1 // pred_region
      _
    $region5: #{_ffn_forward.1} parent=1 // pred_fallthru
      _
    // Predicated region
    $region6: #{_ffn_forward.1} parent=1 // pred_check
      _
    $region7: #{_ffn_forward.1} parent=1 // pred_check_branch
      %15 = sbr.rel (0) target = $region9
    $region8: #{_ffn_forward.1} parent=1 // pred_region
      _
    $region9: #{_ffn_forward.1} parent=1 // pred_fallthru
      _
    // Predicated region
    $region10: #{_ffn_forward.1} parent=1 // pred_check
      _
    $region11: #{_ffn_forward.1} parent=1 // pred_check_branch
      %17 = sbr.rel (0) target = $region13
    $region12: #{_ffn_forward.1} parent=1 // pred_region
      _
    $region13: #{_ffn_forward.1} parent=1 // pred_fallthru
      _
    // Predicated region
    $region14: #{_ffn_forward.1} parent=1 // pred_check
      _
    $region15: #{_ffn_forward.1} parent=1 // pred_check_branch
      %19 = sbr.rel (0) target = $region17
    $region16: #{_ffn_forward.1} parent=1 // pred_region
      _
    $region17: #{_ffn_forward.1} parent=1 // pred_fallthru
      _
    // Predicated region
    $region18: #{_ffn_forward.1} parent=1 // pred_check
      _
    $region19: #{_ffn_forward.1} parent=1 // pred_check_branch
      %21 = sbr.rel (0) target = $region21
    $region20: #{_ffn_forward.1} parent=1 // pred_region
      _
    $region21: #{_ffn_forward.1} parent=1 // pred_fallthru
      _
    // Predicated region
    $region22: #{_ffn_forward.1} parent=1 // pred_check
      _
    $region23: #{_ffn_forward.1} parent=1 // pred_check_branch
      %23 = sbr.rel (0) target = $region25
    $region24: #{_ffn_forward.1} parent=1 // pred_region
      _
    $region25: #{_ffn_forward.1} parent=1 // pred_fallthru
      _
    %p25 = scmp.eq.s32.totalorder 0, 0
    // Predicated region
    $region26: #{_ffn_forward.1} parent=1 // pred_check
      %p26 = pneg %p25
    $region27: #{_ffn_forward.1} parent=1 // pred_check_branch
      %28 = sbr.rel (%p26) target = $region29
    $region28: #{_ffn_forward.1} parent=1 // pred_region
      %v29 = vld [vmem:[%s5] sm:$0xf]
      %v30 = vld [vmem:[%s0] sm:$0xff]
      %v31 = vld [vmem:[%s0 + $0x8] sm:$0xff]
      %vm32 = vcmask 261120
      %v33 = vsel %vm32, %v30, 0.0
      %34 = vadd.xlane.f32.xlu0 %v33
      %v35 = vpop.xlane.xlu0 %34
      %v36 = vsel %vm32, %v31, 0.0
      %37 = vadd.xlane.f32.xlu0 %v36
      %v38 = vpop.xlane.xlu0 %37
      %v39 = vrcp.pop 32.0
      %v40 = vmul.f32 %v35, %v39
      %v41 = vmul.f32 %v38, %v39
      %v42 = vsub.f32 %v30, %v40
      %v43 = vsub.f32 %v31, %v41
      %v44 = vmul.f32 %v42, %v42
      %v45 = vmul.f32 %v43, %v43
      %v46 = vsel %vm32, %v44, 0.0
      %47 = vadd.xlane.f32.xlu0 %v46
      %v48 = vpop.xlane.xlu0 %47
      %v49 = vsel %vm32, %v45, 0.0
      %50 = vadd.xlane.f32.xlu0 %v49
      %v51 = vpop.xlane.xlu0 %50
      %v52 = vmul.f32 %v48, %v39
      %v53 = vmul.f32 %v51, %v39
      %v54 = vadd.f32 %v52, 1e-05
      %v55 = vadd.f32 %v53, 1e-05
      %v56 = vrsqrt.pop %v54
      %v57 = vrsqrt.pop %v55
      %v58 = vmul.f32 %v42, %v56
      %v59 = vmul.f32 %v43, %v57
      %v60 = vlaneseq
      %v61 = vshrl.u32 %v60, 7
      %v62 = vsub.s32 0, %v61
      %v63 = vrot.slane %v29, %v62
      %v64 = vmul.f32 %v58, %v63
      %v65 = vmul.f32 %v59, %v63
      %v66 = vlaneseq
      %v67 = vshrl.u32 %v66, 7
      %v68 = vsub.s32 1, %v67
      %v69 = vrot.slane %v29, %v68
      %v70 = vadd.f32 %v64, %v69
      %v71 = vadd.f32 %v65, %v69
      %72 = vst.msk [vmem:[#allocation3] sm:$0xff] %vm32, %v70
      %73 = vst.msk [vmem:[#allocation3 + $0x8] sm:$0xff] %vm32, %v71
      %74 = vst.msk [vmem:[#allocation2] sm:$0xff] %vm32, 0.0
      %75 = vst.msk [vmem:[#allocation2 + $0x8] sm:$0xff] %vm32, 0.0
    $region29: #{_ffn_forward.1} parent=1 // pred_fallthru
      _
    %v76 = vld [vmem:[#allocation3] sm:$0xff]
    %v77 = vld [vmem:[#allocation3 + $0x8] sm:$0xff]
    %v78 = vpack.c.bf16 %v77, %v76
    %v79 = vld [vmem:[%s1] sm:$0xf]
    %v80 = vld [vmem:[%s1 + $0x4] sm:$0xf]
    %v81 = vld [vmem:[%s1 + $0x8] sm:$0xf]
    %v82 = vld [vmem:[%s1 + $0xc] sm:$0xf]
    %v83 = vld [vmem:[%s2] sm:$0x1]
    %v85 = vlaneseq
    %v86 = vshrl.u32 %v85, 7
    %v87 = vsub.s32 0, %v86
    %v88 = vrot.slane %v83, %v87
    %v94 = vunpack.c.l.b16 %v79
    %v95 = vunpack.c.l.b16 %v80
    %v96 = vunpack.c.l.b16 %v81
    %v97 = vunpack.c.l.b16 %v82
    %v98 = vpack.c.b16 %v95, %v94
    %v99 = vpack.c.b16 %v97, %v96
    %vm102 = vcmask 261120
    %v104 = vsel %vm102, %v78, 0
    %106 = vmatprep.subr.bf16.mxu0 0
    %107 = vmatpush1.bf16.msra.mxu0 0
    %108 = vmatprep.subr.bf16.mxu0 0
    %109 = vmatpush1.bf16.msra.mxu0 0
    %110 = vmatprep.subr.bf16.mxu0 0
    %111 = vmatpush1.bf16.msra.mxu0 0
    %112 = vmatprep.subr.bf16.mxu0 0
    %113 = vmatpush1.bf16.msra.mxu0 0
    %114 = vmatprep.subr.bf16.mxu0 0
    %115 = vmatpush1.bf16.msra.mxu0 0
    %116 = vmatprep.subr.bf16.mxu0 0
    %117 = vmatpush1.bf16.msra.mxu0 0
    %118 = vmatprep.subr.bf16.mxu0 0
    %119 = vmatpush1.bf16.msra.mxu0 %v99
    %120 = vmatprep.subr.bf16.mxu0 0
    %121 = vmatpush1.bf16.msra.mxu0 %v98
    %122 = vmatprep.subr.bf16.mxu0 0
    %123 = vmatpush2.bf16.msra.mxu0 0
    %124 = vmatprep.subr.bf16.mxu0 0
    %125 = vmatpush2.bf16.msra.mxu0 0
    %126 = vmatprep.subr.bf16.mxu0 0
    %127 = vmatpush2.bf16.msra.mxu0 0
    %128 = vmatprep.subr.bf16.mxu0 0
    %129 = vmatpush2.bf16.msra.mxu0 0
    %130 = vmatprep.subr.bf16.mxu0 0
    %131 = vmatpush2.bf16.msra.mxu0 0
    %132 = vmatprep.subr.bf16.mxu0 0
    %133 = vmatpush2.bf16.msra.mxu0 0
    %134 = vmatprep.subr.bf16.mxu0 0
    %135 = vmatpush2.bf16.msra.mxu0 0
    %136 = vmatprep.subr.bf16.mxu0 0
    %137 = vmatpush2.bf16.msra.mxu0 0
    %138 = vmatprep.mubr.bf16.mxu0 0
    %139 = vmatmul.mubr.bf16.gmra.mxu0 %v104
    %v140 = vpop.f32.mrf.mxu0
    %v141 = vadd.f32 %v88, %v140
    %v142 = vpop.f32.mrf.mxu0
    %v143 = vpop.f32.mrf.mxu0
    %v144 = vadd.f32 %v88, %v143
    %v145 = vpop.f32.mrf.mxu0
    %146 = vdwg.mxu0
    %vm147 = vcmp.ge.f32.partialorder %v141, 0.0
    %vm148 = vcmp.ge.f32.partialorder %v144, 0.0
    %v149 = vmul.f32 %v141, 0.01
    %v150 = vmul.f32 %v144, 0.01
    %v151 = vsel %vm147, %v141, %v149
    %v152 = vsel %vm148, %v144, %v150
    %v153 = vpack.c.bf16 %v152, %v151
    %v154 = vld [vmem:[#allocation2] sm:$0xff]
    %v155 = vld [vmem:[#allocation2 + $0x8] sm:$0xff]
    %v156 = vld [vmem:[%s3] sm:$0xf]
    %v157 = vld [vmem:[%s3 + $0x4] sm:$0xf]
    %v160 = vunpack.c.l.b16 %v156
    %v161 = vunpack.c.l.b16 %v157
    %v162 = vpack.c.b16 %v161, %v160
    %vm164 = vcmask 130048
    %v166 = vsel %vm164, %v153, 0
    %168 = vmatprep.subr.bf16.mxu0 0
    %169 = vmatpush1.bf16.msra.mxu0 0
    %170 = vmatprep.subr.bf16.mxu0 0
    %171 = vmatpush1.bf16.msra.mxu0 0
    %172 = vmatprep.subr.bf16.mxu0 0
    %173 = vmatpush1.bf16.msra.mxu0 0
    %174 = vmatprep.subr.bf16.mxu0 0
    %175 = vmatpush1.bf16.msra.mxu0 0
    %176 = vmatprep.subr.bf16.mxu0 0
    %177 = vmatpush1.bf16.msra.mxu0 0
    %178 = vmatprep.subr.bf16.mxu0 0
    %179 = vmatpush1.bf16.msra.mxu0 0
    %180 = vmatprep.subr.bf16.mxu0 0
    %181 = vmatpush1.bf16.msra.mxu0 0
    %182 = vmatprep.subr.bf16.mxu0 0
    %183 = vmatpush1.bf16.msra.mxu0 %v162
    %184 = vmatprep.subr.bf16.mxu0 0
    %185 = vmatpush2.bf16.msra.mxu0 0
    %186 = vmatprep.subr.bf16.mxu0 0
    %187 = vmatpush2.bf16.msra.mxu0 0
    %188 = vmatprep.subr.bf16.mxu0 0
    %189 = vmatpush2.bf16.msra.mxu0 0
    %190 = vmatprep.subr.bf16.mxu0 0
    %191 = vmatpush2.bf16.msra.mxu0 0
    %192 = vmatprep.subr.bf16.mxu0 0
    %193 = vmatpush2.bf16.msra.mxu0 0
    %194 = vmatprep.subr.bf16.mxu0 0
    %195 = vmatpush2.bf16.msra.mxu0 0
    %196 = vmatprep.subr.bf16.mxu0 0
    %197 = vmatpush2.bf16.msra.mxu0 0
    %198 = vmatprep.subr.bf16.mxu0 0
    %199 = vmatpush2.bf16.msra.mxu0 0
    %200 = vmatprep.mubr.bf16.mxu0 0
    %201 = vmatmul.mubr.bf16.gmra.mxu0 %v166
    %v202 = vpop.f32.mrf.mxu0
    %v203 = vadd.f32 0.0, %v202
    %v204 = vpop.f32.mrf.mxu0
    %v205 = vpop.f32.mrf.mxu0
    %v206 = vadd.f32 0.0, %v205
    %v207 = vpop.f32.mrf.mxu0
    %208 = vdwg.mxu0
    %v209 = vadd.f32 %v154, %v203
    %v210 = vadd.f32 %v155, %v206
    %211 = vst.msk [vmem:[#allocation2] sm:$0xff] %vm102, %v209
    %212 = vst.msk [vmem:[#allocation2 + $0x8] sm:$0xff] %vm102, %v210
    // Predicated region
    $region30: #{_ffn_forward.1} parent=1 // pred_check
      %p213 = pneg %p25
    $region31: #{_ffn_forward.1} parent=1 // pred_check_branch
      %215 = sbr.rel (%p213) target = $region33
    $region32: #{_ffn_forward.1} parent=1 // pred_region
      %v216 = vld [vmem:[%s5] sm:$0xf]
      %v217 = vld [vmem:[#allocation2] sm:$0xff]
      %v218 = vld [vmem:[#allocation2 + $0x8] sm:$0xff]
      %v219 = vld [vmem:[%s4] sm:$0x1]
      %v221 = vlaneseq
      %v222 = vshrl.u32 %v221, 7
      %v223 = vsub.s32 0, %v222
      %v224 = vrot.slane %v219, %v223
      %v226 = vadd.f32 %v217, %v224
      %v227 = vadd.f32 %v218, %v224
      %vm228 = vcmp.ge.f32.partialorder %v226, 0.0
      %vm229 = vcmp.ge.f32.partialorder %v227, 0.0
      %v230 = vmul.f32 %v226, 0.01
      %v231 = vmul.f32 %v227, 0.01
      %v232 = vsel %vm228, %v226, %v230
      %v233 = vsel %vm229, %v227, %v231
      %v234 = vsel %vm102, %v232, 0.0
      %235 = vadd.xlane.f32.xlu0 %v234
      %v236 = vpop.xlane.xlu0 %235
      %v237 = vsel %vm102, %v233, 0.0
      %238 = vadd.xlane.f32.xlu0 %v237
      %v239 = vpop.xlane.xlu0 %238
      %v240 = vrcp.pop 32.0
      %v241 = vmul.f32 %v236, %v240
      %v242 = vmul.f32 %v239, %v240
      %v243 = vsub.f32 %v232, %v241
      %v244 = vsub.f32 %v233, %v242
      %v245 = vmul.f32 %v243, %v243
      %v246 = vmul.f32 %v244, %v244
      %v247 = vsel %vm102, %v245, 0.0
      %248 = vadd.xlane.f32.xlu0 %v247
      %v249 = vpop.xlane.xlu0 %248
      %v250 = vsel %vm102, %v246, 0.0
      %251 = vadd.xlane.f32.xlu0 %v250
      %v252 = vpop.xlane.xlu0 %251
      %v253 = vmul.f32 %v249, %v240
      %v254 = vmul.f32 %v252, %v240
      %v255 = vadd.f32 %v253, 1e-05
      %v256 = vadd.f32 %v254, 1e-05
      %v257 = vrsqrt.pop %v255
      %v258 = vrsqrt.pop %v256
      %v259 = vmul.f32 %v243, %v257
      %v260 = vmul.f32 %v244, %v258
      %v261 = vlaneseq
      %v262 = vshrl.u32 %v261, 7
      %v263 = vsub.s32 2, %v262
      %v264 = vrot.slane %v216, %v263
      %v265 = vmul.f32 %v259, %v264
      %v266 = vmul.f32 %v260, %v264
      %v267 = vlaneseq
      %v268 = vshrl.u32 %v267, 7
      %v269 = vsub.s32 3, %v268
      %v270 = vrot.slane %v216, %v269
      %v271 = vadd.f32 %v265, %v270
      %v272 = vadd.f32 %v266, %v270
      %273 = vst.msk [vmem:[#allocation4] sm:$0xff] %vm102, %v271
      %274 = vst.msk [vmem:[#allocation4 + $0x8] sm:$0xff] %vm102, %v272
    $region33: #{_ffn_forward.1} parent=1 // pred_fallthru
      _
    // Predicated region
    $region34: #{_ffn_forward.1} parent=1 // pred_check
      _
    $region35: #{_ffn_forward.1} parent=1 // pred_check_branch
      %276 = sbr.rel (0) target = $region37
    $region36: #{_ffn_forward.1} parent=1 // pred_region
      %s278 = ssub.s32 256, 256
      %279 = vsyncadd [#allocation5], %s278
      %s280 = sshll.u32 [#allocation4], 4
      %s281 = int_to_ptr.vmem [resolvable:$true] %s280
      %286 = dma.vmem_to_hbm [thread:$0]  %s281, 256, %s6, [#allocation5], 128, 128, 8
    $region37: #{_ffn_forward.1} parent=1 // pred_fallthru
      _
    // Predicated region
    $region38: #{_ffn_forward.1} parent=1 // pred_check
      _
    $region39: #{_ffn_forward.1} parent=1 // pred_check_branch
      %288 = sbr.rel (0) target = $region41
    $region40: #{_ffn_forward.1} parent=1 // pred_region
      %289 = dma.done [#allocation5], 256
    $region41: #{_ffn_forward.1} parent=1 // pred_fallthru
      _
    %290 = vsyncpa [#allocation5], 1

</llo_original>
